<compile_context>
chip_gen: v7x
topology: tpu7x:2x2x1
jax: 0.10.0
libtpu: 0.0.40
codegen_flags: <defaults>
</compile_context>

<pallas_src>
import functools
import math

import jax
import jax.numpy as jnp
import numpy as np
from jax import lax
from jax.experimental import pallas as pl
from jax.experimental.pallas import tpu as pltpu


# ------------------------------- Pallas kernel --------------------------------

def _conv_proj_kernel(xv_ref, w_ref, b_ref, o_ref, *, width, neg_slope):
    # xv_ref: (1, TH, W+2, 3*Cin)  vertical-tap slab covering TH image rows
    # w_ref : (3, 3*Cin, Cout)     per-dw weight matrices (resident)
    # b_ref : (1, Cout)            bias (resident)
    # o_ref : (TH*W, Cout)         token-major output tile
    xv = xv_ref[0]                                   # (TH, W+2, 3*Cin)
    th, _, k3 = xv.shape
    rows = th * width

    # In-kernel im2col: the three horizontal taps are static slices of the
    # VMEM slab.  With W % 8 == 0 the (TH, W, 3Cin) -> (TH*W, 3Cin) reshape is
    # a pure sublane-tile re-indexing (no data movement).
    y = jnp.dot(xv[:, 0:width, :].reshape(rows, k3), w_ref[0],
                preferred_element_type=jnp.float32)
    y = y + jnp.dot(xv[:, 1:width + 1, :].reshape(rows, k3), w_ref[1],
                    preferred_element_type=jnp.float32)
    y = y + jnp.dot(xv[:, 2:width + 2, :].reshape(rows, k3), w_ref[2],
                    preferred_element_type=jnp.float32)

    y = y + b_ref[...]
    y = jnp.where(y > 0, y, y * neg_slope)           # LeakyReLU (torch default 0.01)
    o_ref[...] = y.astype(o_ref.dtype)


# --------------------------------- wrapper -------------------------------------

def _pick_tile_rows(B, H, W, *, max_tokens=2048, min_steps=8):
    """Image rows per grid step.

    Keeps TH*W a multiple of 8 (sublane tiling), tiles as large as possible
    (<= max_tokens output tokens per step, a few MiB of VMEM double-buffered)
    and >= min_steps grid steps when the shape allows (pipelining + megacore).
    """
    unit = 8 // math.gcd(W, 8)                  # smallest TH with TH*W % 8 == 0
    th_cap = max(unit, (max_tokens // max(W, 1)) // unit * unit)
    th_cap = min(th_cap, ((H + unit - 1) // unit) * unit)
    cands = list(range(th_cap, 0, -unit))       # descending multiples of `unit`
    # Prefer divisors of H (no padded rows); relax the step requirement.
    for want in (min_steps, 4, 2, 1):
        for th in cands:
            if H % th == 0 and B * (H // th) >= want:
                return th
    # Fall back: allow padding H up to a multiple of TH.
    for want in (min_steps, 4, 2, 1):
        for th in cands:
            if B * (-(-H // th)) >= want:
                return th
    return th_cap


def input_proj_forward(x, weight, bias, *, neg_slope=0.01, tile_rows=None,
                       interpret=False):
    """InputProj.forward.  x: (B, Cin, H, W) NCHW, weight: (Cout, Cin, 3, 3) OIHW,
    bias: (Cout,).  Returns (B, H*W, Cout)."""
    B, Cin, H, W = x.shape
    Cout = weight.shape[0]
    assert weight.shape == (Cout, Cin, 3, 3)
    # TODO(synk): stride != 1 and norm_layer is not None are not implemented
    # (the default InputProj config uses stride=1, norm_layer=None).

    # ---- wrapper glue: only touches the tiny Cin-channel input ---------------
    x_nhwc = jnp.transpose(x, (0, 2, 3, 1))                   # (B, H, W, Cin)
    xp = jnp.pad(x_nhwc, ((0, 0), (1, 1), (1, 1), (0, 0)))    # zero pad = 1
    # Vertical taps only: xv[b, h, w', dh*Cin + c] = xp[b, h+dh, w', c]
    xv = jnp.concatenate([xp[:, dh:dh + H] for dh in range(3)], axis=-1)
    K3 = 3 * Cin

    # weight (Cout, Cin, 3, 3) OIHW -> w3[dw, dh*Cin + c, o]
    w3 = jnp.transpose(weight, (3, 2, 1, 0)).reshape(3, K3, Cout)
    bias2d = bias.reshape(1, Cout)

    # ---- tiling: TH image rows (= TH*W output tokens) per grid step ----------
    TH = tile_rows if tile_rows is not None else _pick_tile_rows(B, H, W)
    n_hb = -(-H // TH)
    Hp = n_hb * TH
    if Hp != H:   # pad rows with zeros; the garbage output rows are sliced off
        xv = jnp.pad(xv, ((0, 0), (0, Hp - H), (0, 0), (0, 0)))
    xv_r = xv.reshape(B * n_hb, TH, W + 2, K3)                 # free reshape
    Mp = B * Hp * W
    rows = TH * W

    itemsize = jnp.dtype(x.dtype).itemsize
    bytes_accessed = (int(xv_r.size) * xv_r.dtype.itemsize
                      + int(w3.size) * w3.dtype.itemsize
                      + int(bias2d.size) * bias2d.dtype.itemsize
                      + Mp * Cout * itemsize)

    out2d = pl.pallas_call(
        functools.partial(_conv_proj_kernel, width=W, neg_slope=neg_slope),
        out_shape=jax.ShapeDtypeStruct((Mp, Cout), x.dtype),
        grid=(B * n_hb,),
        in_specs=[
            pl.BlockSpec((1, TH, W + 2, K3), lambda i: (i, 0, 0, 0)),  # row slab
            pl.BlockSpec((3, K3, Cout), lambda i: (0, 0, 0)),          # weights
            pl.BlockSpec((1, Cout), lambda i: (0, 0)),                 # bias
        ],
        out_specs=pl.BlockSpec((rows, Cout), lambda i: (i, 0)),
        compiler_params=pltpu.CompilerParams(
            dimension_semantics=("parallel",),
        ),
        cost_estimate=pl.CostEstimate(
            flops=2 * B * H * W * 9 * Cin * Cout,
            transcendentals=0,
            bytes_accessed=bytes_accessed),
        interpret=interpret,
    )(xv_r, w3, bias2d)

    out = out2d.reshape(B, Hp * W, Cout)       # free: byte-identical layout
    if Hp != H:
        out = out[:, :H * W, :]
    return out


# ----------------------------- pure-JAX reference ------------------------------

def input_proj_reference(x, weight, bias, *, neg_slope=0.01):
    y = lax.conv_general_dilated(
        x, weight, window_strides=(1, 1), padding=((1, 1), (1, 1)),
        dimension_numbers=("NCHW", "OIHW", "NCHW"),
        precision=lax.Precision.HIGHEST)
    y = y + bias[None, :, None, None]
    y = jnp.where(y > 0, y, y * neg_slope)
    B, Cout, H, W = y.shape
    return y.reshape(B, Cout, H * W).transpose(0, 2, 1)


# ------------------------------------ main --------------------------------------

if __name__ == "__main__":
    key = jax.random.PRNGKey(0)
    B, Cin, H, W, Cout = 2, 3, 16, 16, 64

    k1, k2, k3 = jax.random.split(key, 3)
    x = jax.random.normal(k1, (B, Cin, H, W), jnp.float32)
    weight = jax.random.normal(k2, (Cout, Cin, 3, 3), jnp.float32) * 0.1
    bias = jax.random.normal(k3, (Cout,), jnp.float32) * 0.1

    out = jax.block_until_ready(input_proj_forward(x, weight, bias))
    ref = jax.block_until_ready(input_proj_reference(x, weight, bias))

    assert out.shape == (B, H * W, Cout)
    np.testing.assert_allclose(np.asarray(out), np.asarray(ref),
                               rtol=1e-3, atol=1e-3)
    print("KERNEL_OK")
</pallas_src>

<mosaic_0001>
module attributes {stable_mosaic.version = 11 : i64} {
  func.func @_conv_proj_kernel(%arg0: i32, %arg1: memref<1x4x18x9xf32, #tpu.memory_space<vmem>>, %arg2: memref<3x9x64xf32, #tpu.memory_space<vmem>>, %arg3: memref<1x64xf32, #tpu.memory_space<vmem>>, %arg4: memref<64x64xf32, #tpu.memory_space<vmem>>) attributes {dimension_semantics = [#tpu.dimension_semantics<parallel>], iteration_bounds = array<i64: 8>, scalar_prefetch = 0 : i64, scratch_operands = 0 : i64, tpu.core_type = #tpu.core_type<tc>, window_params = [{transform_indices = @transform_0, window_bounds = array<i64: 1, 4, 18, 9>}, {pipeline_mode = #tpu.pipeline_mode<synchronous>, transform_indices = @transform_1, window_bounds = array<i64: 3, 9, 64>}, {pipeline_mode = #tpu.pipeline_mode<synchronous>, transform_indices = @transform_2, window_bounds = array<i64: 1, 64>}, {transform_indices = @transform_3, window_bounds = array<i64: 64, 64>}]} {
    %c0 = arith.constant 0 : index
    %c0_0 = arith.constant 0 : index
    %c0_1 = arith.constant 0 : index
    %c0_2 = arith.constant 0 : index
    %0 = vector.load %arg1[%c0, %c0_0, %c0_1, %c0_2] : memref<1x4x18x9xf32, #tpu.memory_space<vmem>>, vector<1x4x18x9xf32>
    %1 = vector.shape_cast %0 : vector<1x4x18x9xf32> to vector<4x18x9xf32>
    %2 = vector.extract_strided_slice %1 {offsets = [0, 0, 0], sizes = [4, 16, 9], strides = [1, 1, 1]} : vector<4x18x9xf32> to vector<4x16x9xf32>
    %3 = vector.shape_cast %2 : vector<4x16x9xf32> to vector<64x9xf32>
    %c0_3 = arith.constant 0 : index
    %c0_4 = arith.constant 0 : index
    %c0_5 = arith.constant 0 : index
    %4 = vector.load %arg2[%c0_3, %c0_4, %c0_5] : memref<3x9x64xf32, #tpu.memory_space<vmem>>, vector<1x9x64xf32>
    %5 = vector.shape_cast %4 : vector<1x9x64xf32> to vector<9x64xf32>
    %cst = arith.constant dense<0.000000e+00> : vector<64x64xf32>
    %6 = tpu.matmul %3, %5, %cst {dimension_numbers = #tpu.dot_dimension_numbers<[1], [0], [0], [1], [0, 0, 1, 1], [], []>} : vector<64x9xf32>, vector<9x64xf32>, vector<64x64xf32> -> vector<64x64xf32>
    %7 = vector.extract_strided_slice %1 {offsets = [0, 1, 0], sizes = [4, 16, 9], strides = [1, 1, 1]} : vector<4x18x9xf32> to vector<4x16x9xf32>
    %8 = vector.shape_cast %7 : vector<4x16x9xf32> to vector<64x9xf32>
    %c1 = arith.constant 1 : index
    %c0_6 = arith.constant 0 : index
    %c0_7 = arith.constant 0 : index
    %9 = vector.load %arg2[%c1, %c0_6, %c0_7] : memref<3x9x64xf32, #tpu.memory_space<vmem>>, vector<1x9x64xf32>
    %10 = vector.shape_cast %9 : vector<1x9x64xf32> to vector<9x64xf32>
    %cst_8 = arith.constant dense<0.000000e+00> : vector<64x64xf32>
    %11 = tpu.matmul %8, %10, %cst_8 {dimension_numbers = #tpu.dot_dimension_numbers<[1], [0], [0], [1], [0, 0, 1, 1], [], []>} : vector<64x9xf32>, vector<9x64xf32>, vector<64x64xf32> -> vector<64x64xf32>
    %12 = arith.addf %6, %11 : vector<64x64xf32>
    %13 = vector.extract_strided_slice %1 {offsets = [0, 2, 0], sizes = [4, 16, 9], strides = [1, 1, 1]} : vector<4x18x9xf32> to vector<4x16x9xf32>
    %14 = vector.shape_cast %13 : vector<4x16x9xf32> to vector<64x9xf32>
    %c2 = arith.constant 2 : index
    %c0_9 = arith.constant 0 : index
    %c0_10 = arith.constant 0 : index
    %15 = vector.load %arg2[%c2, %c0_9, %c0_10] : memref<3x9x64xf32, #tpu.memory_space<vmem>>, vector<1x9x64xf32>
    %16 = vector.shape_cast %15 : vector<1x9x64xf32> to vector<9x64xf32>
    %cst_11 = arith.constant dense<0.000000e+00> : vector<64x64xf32>
    %17 = tpu.matmul %14, %16, %cst_11 {dimension_numbers = #tpu.dot_dimension_numbers<[1], [0], [0], [1], [0, 0, 1, 1], [], []>} : vector<64x9xf32>, vector<9x64xf32>, vector<64x64xf32> -> vector<64x64xf32>
    %18 = arith.addf %12, %17 : vector<64x64xf32>
    %c0_12 = arith.constant 0 : index
    %c0_13 = arith.constant 0 : index
    %19 = vector.load %arg3[%c0_12, %c0_13] : memref<1x64xf32, #tpu.memory_space<vmem>>, vector<1x64xf32>
    %20 = vector.broadcast %19 : vector<1x64xf32> to vector<64x64xf32>
    %21 = arith.addf %18, %20 : vector<64x64xf32>
    %cst_14 = arith.constant 0.000000e+00 : f32
    %22 = vector.broadcast %cst_14 : f32 to vector<64x64xf32>
    %23 = arith.cmpf ogt, %21, %22 : vector<64x64xf32>
    %cst_15 = arith.constant 0.00999999977 : f32
    %24 = vector.broadcast %cst_15 : f32 to vector<64x64xf32>
    %25 = arith.mulf %21, %24 : vector<64x64xf32>
    %26 = arith.select %23, %21, %25 : vector<64x64xi1>, vector<64x64xf32>
    %c0_16 = arith.constant 0 : index
    %c0_17 = arith.constant 0 : index
    %27 = vector.load %arg4[%c0_16, %c0_17] : memref<64x64xf32, #tpu.memory_space<vmem>>, vector<64x64xf32>
    tpu.vector_store %arg4[%c0_16, %c0_17], %26 {strides = array<i32>} : memref<64x64xf32, #tpu.memory_space<vmem>>, vector<64x64xf32>,
    return
  }
  func.func @transform_0(%arg0: i32) -> (i32, i32, i32, i32) {
    %c0_i32 = arith.constant 0 : i32
    %c0_i32_0 = arith.constant 0 : i32
    %c0_i32_1 = arith.constant 0 : i32
    %c0_i32_2 = arith.constant 0 : i32
    return %arg0, %c0_i32, %c0_i32_0, %c0_i32_1 : i32, i32, i32, i32
  }
  func.func @transform_1(%arg0: i32) -> (i32, i32, i32) {
    %c0_i32 = arith.constant 0 : i32
    %c0_i32_0 = arith.constant 0 : i32
    %c0_i32_1 = arith.constant 0 : i32
    %c0_i32_2 = arith.constant 0 : i32
    return %c0_i32, %c0_i32_0, %c0_i32_1 : i32, i32, i32
  }
  func.func @transform_2(%arg0: i32) -> (i32, i32) {
    %c0_i32 = arith.constant 0 : i32
    %c0_i32_0 = arith.constant 0 : i32
    %c0_i32_1 = arith.constant 0 : i32
    return %c0_i32, %c0_i32_0 : i32, i32
  }
  func.func @transform_3(%arg0: i32) -> (i32, i32) {
    %c0_i32 = arith.constant 0 : i32
    %c0_i32_0 = arith.constant 0 : i32
    return %arg0, %c0_i32 : i32, i32
  }
}

</mosaic_0001>

<llo_original>
// kernel: tpu_custom_call.1
$region0: #{tpu_custom_call.1}
  #allocation0 [shape = 'u32[]', space=smem, size = 0x4, offset = 0x4, fixed_abs, tag = 'smem constant byte address 0x4 - core index']
  #allocation1 [shape = 'u32[144,128]{1,0:T(1,128)}', space=vmem, size = 0x12000, scoped, tag = 'internal scratch']
  %s0 = inlined_call_operand.vmem [shape: f32[8,4,18,9], index: 0, kind: input, shape index: {}]
  %s1 = inlined_call_operand.vmem [shape: f32[3,9,64], index: 1, kind: input, shape index: {}]
  %s2 = inlined_call_operand.vmem [shape: f32[1,64], index: 2, kind: input, shape index: {}]
  %s3 = inlined_call_operand.vmem [shape: f32[512,64], index: 3, kind: output, shape index: {}]
  %s4 = sld [smem:[#allocation0]]
  $region45: #{tpu_custom_call.1} parent=0
    _
  %s6 = ssub.s32 1, %s4
  %s7 = scalar_select 0, %s6, %s4
  loop: start=0, step=1, limit=10
  $region2: #{tpu_custom_call.1} parent=0 // loop_pre_header
    _
  $region3: #{tpu_custom_call.1} parent=0 // loop_header
    %s9 = sphi 0, %s13
    %p10 = scmp.ge.s32.totalorder %s9, 10
    %s19 = sphi 0, %s21
    %s22 = sphi 0, %s19
    %s23 = sphi 0, %s22
    %s39 = sphi 0, %s23
    %s43 = sphi 0, %s43
    %s45 = sphi 0, %s43
    %s46 = sphi 0, %s45
    %s60 = sphi 0, %s46
    %s64 = sphi 0, %s64
    %s66 = sphi 0, %s64
    %s67 = sphi 0, %s66
    %s81 = sphi 0, %s67
    %s87 = sphi 0, %s89
    %s90 = sphi 0, %s87
    %s91 = sphi 0, %s90
    %s107 = sphi 0, %s91
  $region4: #{tpu_custom_call.1} parent=0 // loop_header_branch
    %12 = sbr.rel (%p10) target = $region8
  $region5: #{tpu_custom_call.1} parent=0 // loop_body
    %s14 = ssub.s32 %s9, 1
    %s15 = ssub.s32 %s9, 2
    %s16 = sadd.s32 %s9, 1
    %s17 = ssub.s32 %s9, %s16
    %p18 = scmp.eq.s32.totalorder %s17, 0
    %s20 = sadd.s32 %s19, 1
    %s21 = scalar_select %p18, %s19, %s20
    %p24 = pneg %p18
    %p25 = scmp.eq.s32.totalorder %s9, 7
    %p26 = por %p24, %p25
    %p27 = scmp.ne.s32.totalorder %s19, %s22
    %p28 = scmp.eq.s32.totalorder %s9, 0
    %p29 = por %p27, %p28
    %p30 = scmp.ne.s32.totalorder %s19, %s22
    %p31 = scmp.eq.s32.totalorder %s14, 7
    %p32 = por %p30, %p31
    %p33 = scmp.ne.s32.totalorder %s22, %s23
    %p34 = scmp.eq.s32.totalorder %s14, 0
    %p35 = por %p33, %p34
    %p36 = scmp.ne.s32.totalorder %s22, %s23
    %p37 = scmp.eq.s32.totalorder %s15, 7
    %p38 = por %p36, %p37
    %p40 = scmp.ne.s32.totalorder %s23, %s39
    %p41 = scmp.eq.s32.totalorder %s15, 0
    %p42 = por %p40, %p41
    %s44 = sadd.s32 %s43, 1
    %p47 = scmp.eq.s32.totalorder %s9, 7
    %p48 = scmp.ne.s32.totalorder %s43, %s45
    %p49 = scmp.eq.s32.totalorder %s9, 0
    %p50 = por %p48, %p49
    %p51 = scmp.ne.s32.totalorder %s43, %s45
    %p52 = scmp.eq.s32.totalorder %s14, 7
    %p53 = por %p51, %p52
    %p54 = scmp.ne.s32.totalorder %s45, %s46
    %p55 = scmp.eq.s32.totalorder %s14, 0
    %p56 = por %p54, %p55
    %p57 = scmp.ne.s32.totalorder %s45, %s46
    %p58 = scmp.eq.s32.totalorder %s15, 7
    %p59 = por %p57, %p58
    %p61 = scmp.ne.s32.totalorder %s46, %s60
    %p62 = scmp.eq.s32.totalorder %s15, 0
    %p63 = por %p61, %p62
    %s65 = sadd.s32 %s64, 1
    %p68 = scmp.eq.s32.totalorder %s9, 7
    %p69 = scmp.ne.s32.totalorder %s64, %s66
    %p70 = scmp.eq.s32.totalorder %s9, 0
    %p71 = por %p69, %p70
    %p72 = scmp.ne.s32.totalorder %s64, %s66
    %p73 = scmp.eq.s32.totalorder %s14, 7
    %p74 = por %p72, %p73
    %p75 = scmp.ne.s32.totalorder %s66, %s67
    %p76 = scmp.eq.s32.totalorder %s14, 0
    %p77 = por %p75, %p76
    %p78 = scmp.ne.s32.totalorder %s66, %s67
    %p79 = scmp.eq.s32.totalorder %s15, 7
    %p80 = por %p78, %p79
    %p82 = scmp.ne.s32.totalorder %s67, %s81
    %p83 = scmp.eq.s32.totalorder %s15, 0
    %p84 = por %p82, %p83
    %s85 = ssub.s32 %s9, %s16
    %p86 = scmp.eq.s32.totalorder %s85, 0
    %s88 = sadd.s32 %s87, 1
    %s89 = scalar_select %p86, %s87, %s88
    %p92 = pneg %p86
    %p93 = scmp.eq.s32.totalorder %s9, 7
    %p94 = por %p92, %p93
    %p95 = scmp.ne.s32.totalorder %s87, %s90
    %p96 = scmp.eq.s32.totalorder %s9, 0
    %p97 = por %p95, %p96
    %p98 = scmp.ne.s32.totalorder %s87, %s90
    %p99 = scmp.eq.s32.totalorder %s14, 7
    %p100 = por %p98, %p99
    %p101 = scmp.ne.s32.totalorder %s90, %s91
    %p102 = scmp.eq.s32.totalorder %s14, 0
    %p103 = por %p101, %p102
    %p104 = scmp.ne.s32.totalorder %s90, %s91
    %p105 = scmp.eq.s32.totalorder %s15, 7
    %p106 = por %p104, %p105
    %p108 = scmp.ne.s32.totalorder %s91, %s107
    %p109 = scmp.eq.s32.totalorder %s15, 0
    %p110 = por %p108, %p109
    %p111 = scmp.le.s32.totalorder 1, %s9
    %p112 = scmp.lt.s32.totalorder %s9, 9
    %p113 = pnand %p111, %p112
    %p114 = pneg %p113
    // Predicated region
    $region9: #{tpu_custom_call.1} parent=5 // pred_check
      _
    $region10: #{tpu_custom_call.1} parent=5 // pred_check_branch
      %116 = sbr.rel (%p113) target = $region12
    $region11: #{tpu_custom_call.1} parent=5 // pred_region
      %s117 = ssub.s32 %s9, 1
      // Predicated region
      $region13: #{tpu_custom_call.1} parent=11 // pred_check
        %p118 = pneg %p56
      $region14: #{tpu_custom_call.1} parent=11 // pred_check_branch
        %120 = sbr.rel (%p118) target = $region16
      $region15: #{tpu_custom_call.1} parent=11 // pred_region
        _
      $region16: #{tpu_custom_call.1} parent=11 // pred_fallthru
        _
      // Predicated region
      $region17: #{tpu_custom_call.1} parent=11 // pred_check
        %p121 = pneg %p77
      $region18: #{tpu_custom_call.1} parent=11 // pred_check_branch
        %123 = sbr.rel (%p121) target = $region20
      $region19: #{tpu_custom_call.1} parent=11 // pred_region
        _
      $region20: #{tpu_custom_call.1} parent=11 // pred_fallthru
        _
    $region12: #{tpu_custom_call.1} parent=5 // pred_fallthru
      _
    %p124 = scmp.lt.s32.totalorder %s9, 8
    // Predicated region
    $region21: #{tpu_custom_call.1} parent=5 // pred_check
      %p125 = pneg %p124
    $region22: #{tpu_custom_call.1} parent=5 // pred_check_branch
      %127 = sbr.rel (%p125) target = $region24
    $region23: #{tpu_custom_call.1} parent=5 // pred_region
      // Predicated region
      $region25: #{tpu_custom_call.1} parent=23 // pred_check
        %p128 = pneg %p29
      $region26: #{tpu_custom_call.1} parent=23 // pred_check_branch
        %130 = sbr.rel (%p128) target = $region28
      $region27: #{tpu_custom_call.1} parent=23 // pred_region
        %p131 = scmp.lt.s32.totalorder %s9, 7
        %s132 = scalar_select %p131, %s9, 7
        %s133 = smul.addr %s132, 12
        %s134 = smul.addr %s133, 8
        %s135 = scalar_lea.vmem %s0, %s134
      $region28: #{tpu_custom_call.1} parent=23 // pred_fallthru
        _
    $region24: #{tpu_custom_call.1} parent=5 // pred_fallthru
      _
    %p136 = scmp.le.s32.totalorder 1, %s9
    %p137 = scmp.lt.s32.totalorder %s9, 9
    %p138 = pnand %p136, %p137
    %p139 = pneg %p138
    // Predicated region
    $region29: #{tpu_custom_call.1} parent=5 // pred_check
      _
    $region30: #{tpu_custom_call.1} parent=5 // pred_check_branch
      %141 = sbr.rel (%p138) target = $region32
    $region31: #{tpu_custom_call.1} parent=5 // pred_region
      %s142 = ssub.s32 %s9, 1
      %p143 = scmp.lt.s32.totalorder %s14, 7
      %s144 = scalar_select %p143, %s14, 7
      %s145 = smul.addr %s144, 12
      %s146 = smul.addr %s145, 8
      %s147 = scalar_lea.vmem %s0, %s146
      %p148 = pneg %p35
      %p149 = pneg %p32
      %p150 = pneg %p56
      %p151 = pneg %p53
      %p152 = pneg %p77
      %p153 = pneg %p74
      %p154 = pneg %p103
      %p155 = pneg %p100
      %s156 = smul.u32 8, %s14
      %p157 = scmp.lt.s32.totalorder %s156, 63
      %s158 = scalar_select %p157, %s156, 63
      %s159 = smul.addr %s158, 8
      %s160 = scalar_lea.vmem %s3, %s159
      %p161 = scmp.lt.s32.totalorder %s14, 7
      %s162 = scalar_select %p161, %s14, 7
      %s163 = smul.addr %s162, 12
      %s164 = smul.addr %s163, 8
      %s165 = scalar_lea.vmem %s0, %s164
      %s166 = smul.u32 8, %s14
      %p167 = scmp.lt.s32.totalorder %s166, 63
      %s168 = scalar_select %p167, %s166, 63
      %s169 = smul.addr %s168, 8
      %s170 = scalar_lea.vmem %s3, %s169
      %s171 = smul.u32 8, %s14
      %v172 = vld [vmem:[%s165] sm:$0xff]
      %v173 = vld [vmem:[%s165 + $0x8] sm:$0xff]
      %v174 = vld [vmem:[%s165 + $0x10] sm:$0x3]
      %v175 = vld [vmem:[%s165 + $0x18] sm:$0xff]
      %v176 = vld [vmem:[%s165 + $0x20] sm:$0xff]
      %v177 = vld [vmem:[%s165 + $0x28] sm:$0x3]
      %v178 = vld [vmem:[%s165 + $0x30] sm:$0xff]
      %v179 = vld [vmem:[%s165 + $0x38] sm:$0xff]
      %v180 = vld [vmem:[%s165 + $0x40] sm:$0x3]
      %v181 = vld [vmem:[%s165 + $0x48] sm:$0xff]
      %v182 = vld [vmem:[%s165 + $0x50] sm:$0xff]
      %v183 = vld [vmem:[%s165 + $0x58] sm:$0x3]
      %v184 = vld [vmem:[%s1] sm:$0xff]
      %v185 = vld [vmem:[%s1 + $0x8] sm:$0x1]
      %vm198 = vcmask 1046528
      %v199 = vrot.slane %v172, 1
      %v200 = vrot.slane %v173, 1
      %v201 = vsel %vm198, %v199, %v200
      %v202 = vrot.slane %v174, 1
      %v203 = vsel %vm198, %v200, %v202
      %v204 = vrot.slane %v175, 1
      %v205 = vrot.slane %v176, 1
      %v206 = vsel %vm198, %v204, %v205
      %v207 = vrot.slane %v177, 1
      %v208 = vsel %vm198, %v205, %v207
      %v209 = vrot.slane %v178, 1
      %v210 = vrot.slane %v179, 1
      %v211 = vsel %vm198, %v209, %v210
      %v212 = vrot.slane %v180, 1
      %v213 = vsel %vm198, %v210, %v212
      %v214 = vrot.slane %v181, 1
      %v215 = vrot.slane %v182, 1
      %v216 = vsel %vm198, %v214, %v215
      %v217 = vrot.slane %v183, 1
      %v218 = vsel %vm198, %v215, %v217
      %s219 = scalar_lea.vmem %s1, 16
      %v220 = vld [vmem:[%s219] sm:$0xff]
      %v221 = vld [vmem:[%s219 + $0x8] sm:$0x1]
      %vm222 = vcmask 72704
      %v223 = vsel %vm222, %v201, 0
      %v225 = vsel %vm222, %v203, 0
      %v227 = vsel %vm222, %v206, 0
      %v229 = vsel %vm222, %v208, 0
      %v231 = vsel %vm222, %v211, 0
      %v233 = vsel %vm222, %v213, 0
      %v235 = vsel %vm222, %v216, 0
      %v237 = vsel %vm222, %v218, 0
      %vm239 = vcmask 1040384
      %v241 = vsel %vm239, %v221, 0
      %243 = vmatprep.subr.mxu0 0.0
      %244 = vmatpush1.msra.mxu0 %v220
      %245 = vmatprep.subr.mxu0 0.0
      %246 = vmatpush1.msra.mxu0 %v241
      %247 = vmatprep.subr.mxu0 0.0
      %248 = vmatpush1.msra.mxu0 0.0
      %249 = vmatprep.subr.mxu0 0.0
      %250 = vmatpush1.msra.mxu0 0.0
      %251 = vmatprep.subr.mxu0 0.0
      %252 = vmatpush1.msra.mxu0 0.0
      %253 = vmatprep.subr.mxu0 0.0
      %254 = vmatpush1.msra.mxu0 0.0
      %255 = vmatprep.subr.mxu0 0.0
      %256 = vmatpush1.msra.mxu0 0.0
      %257 = vmatprep.subr.mxu0 0.0
      %258 = vmatpush1.msra.mxu0 0.0
      %259 = vmatprep.subr.mxu0 0.0
      %260 = vmatpush1.msra.mxu0 0.0
      %261 = vmatprep.subr.mxu0 0.0
      %262 = vmatpush1.msra.mxu0 0.0
      %263 = vmatprep.subr.mxu0 0.0
      %264 = vmatpush1.msra.mxu0 0.0
      %265 = vmatprep.subr.mxu0 0.0
      %266 = vmatpush1.msra.mxu0 0.0
      %267 = vmatprep.subr.mxu0 0.0
      %268 = vmatpush1.msra.mxu0 0.0
      %269 = vmatprep.subr.mxu0 0.0
      %270 = vmatpush1.msra.mxu0 0.0
      %271 = vmatprep.subr.mxu0 0.0
      %272 = vmatpush1.msra.mxu0 0.0
      %273 = vmatprep.subr.mxu0 0.0
      %274 = vmatpush1.msra.mxu0 0.0
      %275 = vmatprep.subr.mxu0 0.0
      %276 = vmatpush1.msra.mxu0 0.0
      %277 = vmatprep.subr.mxu0 0.0
      %278 = vmatpush1.msra.mxu0 0.0
      %279 = vmatprep.subr.mxu0 0.0
      %280 = vmatpush1.msra.mxu0 0.0
      %281 = vmatprep.subr.mxu0 0.0
      %282 = vmatpush1.msra.mxu0 0.0
      %283 = vmatprep.subr.mxu0 0.0
      %284 = vmatpush1.msra.mxu0 0.0
      %285 = vmatprep.subr.mxu0 0.0
      %286 = vmatpush1.msra.mxu0 0.0
      %287 = vmatprep.subr.mxu0 0.0
      %288 = vmatpush1.msra.mxu0 0.0
      %289 = vmatprep.subr.mxu0 0.0
      %290 = vmatpush1.msra.mxu0 0.0
      %291 = vmatprep.subr.mxu0 0.0
      %292 = vmatpush1.msra.mxu0 0.0
      %293 = vmatprep.subr.mxu0 0.0
      %294 = vmatpush1.msra.mxu0 0.0
      %295 = vmatprep.subr.mxu0 0.0
      %296 = vmatpush1.msra.mxu0 0.0
      %297 = vmatprep.subr.mxu0 0.0
      %298 = vmatpush1.msra.mxu0 0.0
      %299 = vmatprep.subr.mxu0 0.0
      %300 = vmatpush1.msra.mxu0 0.0
      %301 = vmatprep.subr.mxu0 0.0
      %302 = vmatpush1.msra.mxu0 0.0
      %303 = vmatprep.subr.mxu0 0.0
      %304 = vmatpush1.msra.mxu0 0.0
      %305 = vmatprep.subr.mxu0 0.0
      %306 = vmatpush1.msra.mxu0 0.0
      %307 = vmatprep.mubr.f32.mxu0 0.0
      %308 = vmatmul.mubr.f32.gmra.mrb[0].mxu0 %v223
      %v309 = vpop.f32.mrb[0].mxu0
      %v310 = vadd.f32 0.0, %v309
      %v311 = vpop.f32.mrb[0].mxu0
      %312 = vmatprep.mubr.f32.mxu0 0.0
      %313 = vmatmul.mubr.f32.gmra.mrb[0].mxu0 %v225
      %v314 = vpop.f32.mrb[0].mxu0
      %v315 = vadd.f32 0.0, %v314
      %v316 = vpop.f32.mrb[0].mxu0
      %317 = vmatprep.mubr.f32.mxu0 0.0
      %318 = vmatmul.mubr.f32.gmra.mrb[0].mxu0 %v227
      %v319 = vpop.f32.mrb[0].mxu0
      %v320 = vadd.f32 0.0, %v319
      %v321 = vpop.f32.mrb[0].mxu0
      %322 = vmatprep.mubr.f32.mxu0 0.0
      %323 = vmatmul.mubr.f32.gmra.mrb[0].mxu0 %v229
      %v324 = vpop.f32.mrb[0].mxu0
      %v325 = vadd.f32 0.0, %v324
      %v326 = vpop.f32.mrb[0].mxu0
      %327 = vmatprep.mubr.f32.mxu0 0.0
      %328 = vmatmul.mubr.f32.gmra.mrb[0].mxu0 %v231
      %v329 = vpop.f32.mrb[0].mxu0
      %v330 = vadd.f32 0.0, %v329
      %v331 = vpop.f32.mrb[0].mxu0
      %332 = vmatprep.mubr.f32.mxu0 0.0
      %333 = vmatmul.mubr.f32.gmra.mrb[0].mxu0 %v233
      %v334 = vpop.f32.mrb[0].mxu0
      %v335 = vadd.f32 0.0, %v334
      %v336 = vpop.f32.mrb[0].mxu0
      %337 = vmatprep.mubr.f32.mxu0 0.0
      %338 = vmatmul.mubr.f32.gmra.mrb[0].mxu0 %v235
      %v339 = vpop.f32.mrb[0].mxu0
      %v340 = vadd.f32 0.0, %v339
      %v341 = vpop.f32.mrb[0].mxu0
      %342 = vmatprep.mubr.f32.mxu0 0.0
      %343 = vmatmul.mubr.f32.gmra.mrb[0].mxu0 %v237
      %v344 = vpop.f32.mrb[0].mxu0
      %v345 = vadd.f32 0.0, %v344
      %v346 = vpop.f32.mrb[0].mxu0
      %347 = vdwg.mxu0
      %v348 = vsel %vm222, %v172, 0
      %v350 = vsel %vm222, %v173, 0
      %v352 = vsel %vm222, %v175, 0
      %v354 = vsel %vm222, %v176, 0
      %v356 = vsel %vm222, %v178, 0
      %v358 = vsel %vm222, %v179, 0
      %v360 = vsel %vm222, %v181, 0
      %v362 = vsel %vm222, %v182, 0
      %v365 = vsel %vm239, %v185, 0
      %367 = vmatprep.subr.mxu0 0.0
      %368 = vmatpush1.msra.mxu0 %v184
      %369 = vmatprep.subr.mxu0 0.0
      %370 = vmatpush1.msra.mxu0 %v365
      %371 = vmatprep.subr.mxu0 0.0
      %372 = vmatpush1.msra.mxu0 0.0
      %373 = vmatprep.subr.mxu0 0.0
      %374 = vmatpush1.msra.mxu0 0.0
      %375 = vmatprep.subr.mxu0 0.0
      %376 = vmatpush1.msra.mxu0 0.0
      %377 = vmatprep.subr.mxu0 0.0
      %378 = vmatpush1.msra.mxu0 0.0
      %379 = vmatprep.subr.mxu0 0.0
      %380 = vmatpush1.msra.mxu0 0.0
      %381 = vmatprep.subr.mxu0 0.0
      %382 = vmatpush1.msra.mxu0 0.0
      %383 = vmatprep.subr.mxu0 0.0
      %384 = vmatpush1.msra.mxu0 0.0
      %385 = vmatprep.subr.mxu0 0.0
      %386 = vmatpush1.msra.mxu0 0.0
      %387 = vmatprep.subr.mxu0 0.0
      %388 = vmatpush1.msra.mxu0 0.0
      %389 = vmatprep.subr.mxu0 0.0
      %390 = vmatpush1.msra.mxu0 0.0
      %391 = vmatprep.subr.mxu0 0.0
      %392 = vmatpush1.msra.mxu0 0.0
      %393 = vmatprep.subr.mxu0 0.0
      %394 = vmatpush1.msra.mxu0 0.0
      %395 = vmatprep.subr.mxu0 0.0
      %396 = vmatpush1.msra.mxu0 0.0
      %397 = vmatprep.subr.mxu0 0.0
      %398 = vmatpush1.msra.mxu0 0.0
      %399 = vmatprep.subr.mxu0 0.0
      %400 = vmatpush1.msra.mxu0 0.0
      %401 = vmatprep.subr.mxu0 0.0
      %402 = vmatpush1.msra.mxu0 0.0
      %403 = vmatprep.subr.mxu0 0.0
      %404 = vmatpush1.msra.mxu0 0.0
      %405 = vmatprep.subr.mxu0 0.0
      %406 = vmatpush1.msra.mxu0 0.0
      %407 = vmatprep.subr.mxu0 0.0
      %408 = vmatpush1.msra.mxu0 0.0
      %409 = vmatprep.subr.mxu0 0.0
      %410 = vmatpush1.msra.mxu0 0.0
      %411 = vmatprep.subr.mxu0 0.0
      %412 = vmatpush1.msra.mxu0 0.0
      %413 = vmatprep.subr.mxu0 0.0
      %414 = vmatpush1.msra.mxu0 0.0
      %415 = vmatprep.subr.mxu0 0.0
      %416 = vmatpush1.msra.mxu0 0.0
      %417 = vmatprep.subr.mxu0 0.0
      %418 = vmatpush1.msra.mxu0 0.0
      %419 = vmatprep.subr.mxu0 0.0
      %420 = vmatpush1.msra.mxu0 0.0
      %421 = vmatprep.subr.mxu0 0.0
      %422 = vmatpush1.msra.mxu0 0.0
      %423 = vmatprep.subr.mxu0 0.0
      %424 = vmatpush1.msra.mxu0 0.0
      %425 = vmatprep.subr.mxu0 0.0
      %426 = vmatpush1.msra.mxu0 0.0
      %427 = vmatprep.subr.mxu0 0.0
      %428 = vmatpush1.msra.mxu0 0.0
      %429 = vmatprep.subr.mxu0 0.0
      %430 = vmatpush1.msra.mxu0 0.0
      %431 = vmatprep.mubr.f32.mxu0 0.0
      %432 = vmatmul.mubr.f32.gmra.mrb[0].mxu0 %v348
      %v433 = vpop.f32.mrb[0].mxu0
      %v434 = vadd.f32 %v310, %v433
      %v435 = vpop.f32.mrb[0].mxu0
      %436 = vmatprep.mubr.f32.mxu0 0.0
      %437 = vmatmul.mubr.f32.gmra.mrb[0].mxu0 %v350
      %v438 = vpop.f32.mrb[0].mxu0
      %v439 = vadd.f32 %v315, %v438
      %v440 = vpop.f32.mrb[0].mxu0
      %441 = vmatprep.mubr.f32.mxu0 0.0
      %442 = vmatmul.mubr.f32.gmra.mrb[0].mxu0 %v352
      %v443 = vpop.f32.mrb[0].mxu0
      %v444 = vadd.f32 %v320, %v443
      %v445 = vpop.f32.mrb[0].mxu0
      %446 = vmatprep.mubr.f32.mxu0 0.0
      %447 = vmatmul.mubr.f32.gmra.mrb[0].mxu0 %v354
      %v448 = vpop.f32.mrb[0].mxu0
      %v449 = vadd.f32 %v325, %v448
      %v450 = vpop.f32.mrb[0].mxu0
      %451 = vmatprep.mubr.f32.mxu0 0.0
      %452 = vmatmul.mubr.f32.gmra.mrb[0].mxu0 %v356
      %v453 = vpop.f32.mrb[0].mxu0
      %v454 = vadd.f32 %v330, %v453
      %v455 = vpop.f32.mrb[0].mxu0
      %456 = vmatprep.mubr.f32.mxu0 0.0
      %457 = vmatmul.mubr.f32.gmra.mrb[0].mxu0 %v358
      %v458 = vpop.f32.mrb[0].mxu0
      %v459 = vadd.f32 %v335, %v458
      %v460 = vpop.f32.mrb[0].mxu0
      %461 = vmatprep.mubr.f32.mxu0 0.0
      %462 = vmatmul.mubr.f32.gmra.mrb[0].mxu0 %v360
      %v463 = vpop.f32.mrb[0].mxu0
      %v464 = vadd.f32 %v340, %v463
      %v465 = vpop.f32.mrb[0].mxu0
      %466 = vmatprep.mubr.f32.mxu0 0.0
      %467 = vmatmul.mubr.f32.gmra.mrb[0].mxu0 %v362
      %v468 = vpop.f32.mrb[0].mxu0
      %v469 = vadd.f32 %v345, %v468
      %v470 = vpop.f32.mrb[0].mxu0
      %471 = vdwg.mxu0
      %vm472 = vcmask 1045504
      %v473 = vrot.slane %v172, 2
      %v474 = vrot.slane %v173, 2
      %v475 = vsel %vm472, %v473, %v474
      %v476 = vrot.slane %v174, 2
      %v477 = vsel %vm472, %v474, %v476
      %v478 = vrot.slane %v175, 2
      %v479 = vrot.slane %v176, 2
      %v480 = vsel %vm472, %v478, %v479
      %v481 = vrot.slane %v177, 2
      %v482 = vsel %vm472, %v479, %v481
      %v483 = vrot.slane %v178, 2
      %v484 = vrot.slane %v179, 2
      %v485 = vsel %vm472, %v483, %v484
      %v486 = vrot.slane %v180, 2
      %v487 = vsel %vm472, %v484, %v486
      %v488 = vrot.slane %v181, 2
      %v489 = vrot.slane %v182, 2
      %v490 = vsel %vm472, %v488, %v489
      %v491 = vrot.slane %v183, 2
      %v492 = vsel %vm472, %v489, %v491
      %s493 = scalar_lea.vmem %s1, 32
      %v494 = vld [vmem:[%s493] sm:$0xff]
      %v495 = vld [vmem:[%s493 + $0x8] sm:$0x1]
      %v496 = vsel %vm222, %v475, 0
      %v498 = vsel %vm222, %v477, 0
      %v500 = vsel %vm222, %v480, 0
      %v502 = vsel %vm222, %v482, 0
      %v504 = vsel %vm222, %v485, 0
      %v506 = vsel %vm222, %v487, 0
      %v508 = vsel %vm222, %v490, 0
      %v510 = vsel %vm222, %v492, 0
      %v513 = vsel %vm239, %v495, 0
      %515 = vmatprep.subr.mxu0 0.0
      %516 = vmatpush1.msra.mxu0 %v494
      %517 = vmatprep.subr.mxu0 0.0
      %518 = vmatpush1.msra.mxu0 %v513
      %519 = vmatprep.subr.mxu0 0.0
      %520 = vmatpush1.msra.mxu0 0.0
      %521 = vmatprep.subr.mxu0 0.0
      %522 = vmatpush1.msra.mxu0 0.0
      %523 = vmatprep.subr.mxu0 0.0
      %524 = vmatpush1.msra.mxu0 0.0
      %525 = vmatprep.subr.mxu0 0.0
      %526 = vmatpush1.msra.mxu0 0.0
      %527 = vmatprep.subr.mxu0 0.0
      %528 = vmatpush1.msra.mxu0 0.0
      %529 = vmatprep.subr.mxu0 0.0
      %530 = vmatpush1.msra.mxu0 0.0
      %531 = vmatprep.subr.mxu0 0.0
      %532 = vmatpush1.msra.mxu0 0.0
      %533 = vmatprep.subr.mxu0 0.0
      %534 = vmatpush1.msra.mxu0 0.0
      %535 = vmatprep.subr.mxu0 0.0
      %536 = vmatpush1.msra.mxu0 0.0
      %537 = vmatprep.subr.mxu0 0.0
      %538 = vmatpush1.msra.mxu0 0.0
      %539 = vmatprep.subr.mxu0 0.0
      %540 = vmatpush1.msra.mxu0 0.0
      %541 = vmatprep.subr.mxu0 0.0
      %542 = vmatpush1.msra.mxu0 0.0
      %543 = vmatprep.subr.mxu0 0.0
      %544 = vmatpush1.msra.mxu0 0.0
      %545 = vmatprep.subr.mxu0 0.0
      %546 = vmatpush1.msra.mxu0 0.0
      %547 = vmatprep.subr.mxu0 0.0
      %548 = vmatpush1.msra.mxu0 0.0
      %549 = vmatprep.subr.mxu0 0.0
      %550 = vmatpush1.msra.mxu0 0.0
      %551 = vmatprep.subr.mxu0 0.0
      %552 = vmatpush1.msra.mxu0 0.0
      %553 = vmatprep.subr.mxu0 0.0
      %554 = vmatpush1.msra.mxu0 0.0
      %555 = vmatprep.subr.mxu0 0.0
      %556 = vmatpush1.msra.mxu0 0.0
      %557 = vmatprep.subr.mxu0 0.0
      %558 = vmatpush1.msra.mxu0 0.0
      %559 = vmatprep.subr.mxu0 0.0
      %560 = vmatpush1.msra.mxu0 0.0
      %561 = vmatprep.subr.mxu0 0.0
      %562 = vmatpush1.msra.mxu0 0.0
      %563 = vmatprep.subr.mxu0 0.0
      %564 = vmatpush1.msra.mxu0 0.0
      %565 = vmatprep.subr.mxu0 0.0
      %566 = vmatpush1.msra.mxu0 0.0
      %567 = vmatprep.subr.mxu0 0.0
      %568 = vmatpush1.msra.mxu0 0.0
      %569 = vmatprep.subr.mxu0 0.0
      %570 = vmatpush1.msra.mxu0 0.0
      %571 = vmatprep.subr.mxu0 0.0
      %572 = vmatpush1.msra.mxu0 0.0
      %573 = vmatprep.subr.mxu0 0.0
      %574 = vmatpush1.msra.mxu0 0.0
      %575 = vmatprep.subr.mxu0 0.0
      %576 = vmatpush1.msra.mxu0 0.0
      %577 = vmatprep.subr.mxu0 0.0
      %578 = vmatpush1.msra.mxu0 0.0
      %579 = vmatprep.mubr.f32.mxu0 0.0
      %580 = vmatmul.mubr.f32.gmra.mrb[0].mxu0 %v496
      %v581 = vpop.f32.mrb[0].mxu0
      %v582 = vadd.f32 0.0, %v581
      %v583 = vpop.f32.mrb[0].mxu0
      %584 = vmatprep.mubr.f32.mxu0 0.0
      %585 = vmatmul.mubr.f32.gmra.mrb[0].mxu0 %v498
      %v586 = vpop.f32.mrb[0].mxu0
      %v587 = vadd.f32 0.0, %v586
      %v588 = vpop.f32.mrb[0].mxu0
      %589 = vmatprep.mubr.f32.mxu0 0.0
      %590 = vmatmul.mubr.f32.gmra.mrb[0].mxu0 %v500
      %v591 = vpop.f32.mrb[0].mxu0
      %v592 = vadd.f32 0.0, %v591
      %v593 = vpop.f32.mrb[0].mxu0
      %594 = vmatprep.mubr.f32.mxu0 0.0
      %595 = vmatmul.mubr.f32.gmra.mrb[0].mxu0 %v502
      %v596 = vpop.f32.mrb[0].mxu0
      %v597 = vadd.f32 0.0, %v596
      %v598 = vpop.f32.mrb[0].mxu0
      %599 = vmatprep.mubr.f32.mxu0 0.0
      %600 = vmatmul.mubr.f32.gmra.mrb[0].mxu0 %v504
      %v601 = vpop.f32.mrb[0].mxu0
      %v602 = vadd.f32 0.0, %v601
      %v603 = vpop.f32.mrb[0].mxu0
      %604 = vmatprep.mubr.f32.mxu0 0.0
      %605 = vmatmul.mubr.f32.gmra.mrb[0].mxu0 %v506
      %v606 = vpop.f32.mrb[0].mxu0
      %v607 = vadd.f32 0.0, %v606
      %v608 = vpop.f32.mrb[0].mxu0
      %609 = vmatprep.mubr.f32.mxu0 0.0
      %610 = vmatmul.mubr.f32.gmra.mrb[0].mxu0 %v508
      %v611 = vpop.f32.mrb[0].mxu0
      %v612 = vadd.f32 0.0, %v611
      %v613 = vpop.f32.mrb[0].mxu0
      %614 = vmatprep.mubr.f32.mxu0 0.0
      %615 = vmatmul.mubr.f32.gmra.mrb[0].mxu0 %v510
      %v616 = vpop.f32.mrb[0].mxu0
      %v617 = vadd.f32 0.0, %v616
      %v618 = vpop.f32.mrb[0].mxu0
      %619 = vdwg.mxu0
      %v620 = vadd.f32 %v434, %v582
      %v621 = vadd.f32 %v439, %v587
      %v622 = vadd.f32 %v444, %v592
      %v623 = vadd.f32 %v449, %v597
      %v624 = vadd.f32 %v454, %v602
      %v625 = vadd.f32 %v459, %v607
      %v626 = vadd.f32 %v464, %v612
      %v627 = vadd.f32 %v469, %v617
      %v628 = vld [vmem:[%s2] sm:$0x1]
      %v630 = vlaneseq
      %v631 = vshrl.u32 %v630, 7
      %v632 = vsub.s32 0, %v631
      %v633 = vrot.slane %v628, %v632
      %v635 = vadd.f32 %v620, %v633
      %v636 = vadd.f32 %v621, %v633
      %v637 = vadd.f32 %v622, %v633
      %v638 = vadd.f32 %v623, %v633
      %v639 = vadd.f32 %v624, %v633
      %v640 = vadd.f32 %v625, %v633
      %v641 = vadd.f32 %v626, %v633
      %v642 = vadd.f32 %v627, %v633
      %vm643 = vcmp.gt.f32.partialorder %v635, 0.0
      %vm644 = vcmp.gt.f32.partialorder %v636, 0.0
      %vm645 = vcmp.gt.f32.partialorder %v637, 0.0
      %vm646 = vcmp.gt.f32.partialorder %v638, 0.0
      %vm647 = vcmp.gt.f32.partialorder %v639, 0.0
      %vm648 = vcmp.gt.f32.partialorder %v640, 0.0
      %vm649 = vcmp.gt.f32.partialorder %v641, 0.0
      %vm650 = vcmp.gt.f32.partialorder %v642, 0.0
      %v651 = vmul.f32 %v635, 0.01
      %v652 = vmul.f32 %v636, 0.01
      %v653 = vmul.f32 %v637, 0.01
      %v654 = vmul.f32 %v638, 0.01
      %v655 = vmul.f32 %v639, 0.01
      %v656 = vmul.f32 %v640, 0.01
      %v657 = vmul.f32 %v641, 0.01
      %v658 = vmul.f32 %v642, 0.01
      %v659 = vsel %vm643, %v635, %v651
      %v660 = vsel %vm644, %v636, %v652
      %v661 = vsel %vm645, %v637, %v653
      %v662 = vsel %vm646, %v638, %v654
      %v663 = vsel %vm647, %v639, %v655
      %v664 = vsel %vm648, %v640, %v656
      %v665 = vsel %vm649, %v641, %v657
      %v666 = vsel %vm650, %v642, %v658
      %vm667 = vcmask 523264
      %668 = vst.msk [vmem:[%s170] sm:$0xff] %vm667, %v659
      %669 = vst.msk [vmem:[%s170 + $0x8] sm:$0xff] %vm667, %v660
      %670 = vst.msk [vmem:[%s170 + $0x10] sm:$0xff] %vm667, %v661
      %671 = vst.msk [vmem:[%s170 + $0x18] sm:$0xff] %vm667, %v662
      %672 = vst.msk [vmem:[%s170 + $0x20] sm:$0xff] %vm667, %v663
      %673 = vst.msk [vmem:[%s170 + $0x28] sm:$0xff] %vm667, %v664
      %674 = vst.msk [vmem:[%s170 + $0x30] sm:$0xff] %vm667, %v665
      %675 = vst.msk [vmem:[%s170 + $0x38] sm:$0xff] %vm667, %v666
      %s676 = smul.u32 8, %s14
      %p677 = scmp.lt.s32.totalorder %s676, 63
      %s678 = scalar_select %p677, %s676, 63
      %s679 = smul.addr %s678, 8
      %s680 = scalar_lea.vmem %s3, %s679
      // Predicated region
      $region33: #{tpu_custom_call.1} parent=31 // pred_check
        %p681 = pneg %p100
      $region34: #{tpu_custom_call.1} parent=31 // pred_check_branch
        %683 = sbr.rel (%p681) target = $region36
      $region35: #{tpu_custom_call.1} parent=31 // pred_region
        %s684 = smul.u32 8, %s14
      $region36: #{tpu_custom_call.1} parent=31 // pred_fallthru
        _
    $region32: #{tpu_custom_call.1} parent=5 // pred_fallthru
      _
    %p685 = scmp.le.s32.totalorder 2, %s9
    // Predicated region
    $region37: #{tpu_custom_call.1} parent=5 // pred_check
      %p686 = pneg %p685
    $region38: #{tpu_custom_call.1} parent=5 // pred_check_branch
      %688 = sbr.rel (%p686) target = $region40
    $region39: #{tpu_custom_call.1} parent=5 // pred_region
      %s689 = ssub.s32 %s9, 2
      // Predicated region
      $region41: #{tpu_custom_call.1} parent=39 // pred_check
        %p690 = pneg %p106
      $region42: #{tpu_custom_call.1} parent=39 // pred_check_branch
        %692 = sbr.rel (%p690) target = $region44
      $region43: #{tpu_custom_call.1} parent=39 // pred_region
        %s693 = smul.u32 8, %s15
        %p694 = scmp.lt.s32.totalorder %s693, 63
        %s695 = scalar_select %p694, %s693, 63
        %s696 = smul.addr %s695, 8
        %s697 = scalar_lea.vmem %s3, %s696
      $region44: #{tpu_custom_call.1} parent=39 // pred_fallthru
        _
    $region40: #{tpu_custom_call.1} parent=5 // pred_fallthru
      _
  $region6: #{tpu_custom_call.1} parent=0 // loop_footer
    %s13 = sadd.s32 1, %s9
  $region7: #{tpu_custom_call.1} parent=0 // loop_footer_branch
    %8 = sbr.rel target = $region3
  $region8: #{tpu_custom_call.1} parent=0 // loop_exit
    _

</llo_original>
